<compile_context>
chip_gen: v7x
topology: tpu7x:2x2x1
jax: 0.10.0
libtpu: 0.0.40
codegen_flags: <defaults>
</compile_context>

<pallas_src>
from functools import partial

import jax
import jax.numpy as jnp
from jax.experimental import pallas as pl
from jax.experimental.pallas import tpu as pltpu

HIDDEN = 768
NUM_CLASSES = 2


def _round_up(x, m):
    return ((x + m - 1) // m) * m


def _vmem_capacity_bytes():
    """Physical VMEM per TensorCore (generation-aware), conservative fallback."""
    try:
        info = pltpu.get_tpu_info()
        for name in ("vmem_capacity_bytes", "vmem_bytes", "vmem_size_bytes"):
            cap = getattr(info, name, None)
            if cap:
                return int(cap)
    except Exception:
        pass
    return 64 * 1024 * 1024  # conservative: v7x has 64 MiB per TensorCore


def _head_kernel(emb_ref, w_ref, b_ref, o_ref, acc_ref, *, inv_seq_len, seq_rem):
    # emb_ref: [Bt, St, H] streamed tile of the embedding (auto double-buffered)
    # w_ref:   [H, 2]   resident across the whole grid (native dtype)
    # b_ref:   [1, 2]   resident (f32)
    # o_ref:   [Bt, 2]  output block (same block across the seq axis)
    # acc_ref: [Bt, H]  lane-dense f32 seq-sum accumulator (matmul hoisted to finalize)
    s = pl.program_id(1)
    last = pl.num_programs(1) - 1

    @pl.when(s == 0)
    def _():
        acc_ref[...] = jnp.zeros_like(acc_ref)

    if seq_rem == 0:
        # Every seq tile is full: plain f32 partial sum (works for bf16 streams too).
        acc_ref[...] += jnp.sum(emb_ref[...], axis=1, dtype=jnp.float32)
    else:
        @pl.when(s != last)
        def _():
            acc_ref[...] += jnp.sum(emb_ref[...], axis=1, dtype=jnp.float32)

    @pl.when(s == last)
    def _():
        if seq_rem != 0:
            # Last seq tile is partial: only the first `seq_rem` rows hold valid data
            # (the rest of the block buffer is stale) — sum just the valid slice.
            acc_ref[...] += jnp.sum(emb_ref[:, :seq_rem, :], axis=1, dtype=jnp.float32)
        # mean = sum * (1/true_S); dropout is identity in eval mode; single tiny matmul.
        logits = jnp.dot(acc_ref[...], w_ref[...], preferred_element_type=jnp.float32)
        o_ref[...] = (logits * inv_seq_len + b_ref[...]).astype(o_ref.dtype)


def bert_classifier_head(embedding, head_weight, head_bias, *, block_b=None, block_s=None):
    """embedding: [B, S, 768] (f32 or bf16), head_weight: [2, 768] (PyTorch layout), head_bias: [2]."""
    B, S, H = embedding.shape
    assert H == HIDDEN

    itemsize = embedding.dtype.itemsize
    granule = 16 if embedding.dtype == jnp.bfloat16 else 8  # sublane packing granule
    vmem_cap = _vmem_capacity_bytes()

    # Batch tile: multiple of 8 (or the full batch for tiny B).  When B >= 16, cap it so
    # the "parallel" batch axis has >=2 blocks (shards across v7x's 2 TensorCores).
    if block_b is None:
        block_b = 16
    block_b = max(8, _round_up(block_b, 8))
    if B <= 8:
        Bt = B
    else:
        Bt = min(block_b, max(8, 8 * (B // 16)))

    # Seq tile: sized from the per-generation VMEM budget (bigger tiles on v5e/v6e's
    # 128 MiB, ~20 MiB tiles on v7x's 64 MiB), rounded to the packing granule; use the
    # full S if it already fits (single tile, no remainder, never any padding copy).
    if block_s is None:
        target_tile_bytes = (26 << 20) if vmem_cap >= (96 << 20) else (20 << 20)
        block_s = max(granule, (target_tile_bytes // (Bt * H * itemsize)) // granule * granule)
    if S <= block_s:
        St = S
    else:
        St = max(granule, (block_s // granule) * granule)

    grid = (pl.cdiv(B, Bt), pl.cdiv(S, St))
    seq_rem = (S % St) if St < S else 0

    w_t = jnp.asarray(head_weight).T                                  # [768, 2], native dtype
    b2d = jnp.asarray(head_bias).reshape(1, NUM_CLASSES).astype(jnp.float32)

    # VMEM budget: double-buffered streamed tile + resident acc/W/b + margin, capped
    # safely below the physical per-core capacity (v7x: 64 MiB -> ~56 MiB ceiling).
    tile_bytes = Bt * St * H * itemsize
    resident = Bt * H * 4 + 64 * 1024
    need = 2 * tile_bytes + resident + (4 << 20)
    vmem_limit = int(min(vmem_cap - (8 << 20), max(32 << 20, need)))

    return pl.pallas_call(
        partial(_head_kernel, inv_seq_len=1.0 / S, seq_rem=seq_rem),
        out_shape=jax.ShapeDtypeStruct((B, NUM_CLASSES), jnp.float32),
        grid=grid,
        in_specs=[
            pl.BlockSpec((Bt, St, H), lambda b, s: (b, s, 0)),        # streamed embedding
            pl.BlockSpec((H, NUM_CLASSES), lambda b, s: (0, 0)),      # W.T resident
            pl.BlockSpec((1, NUM_CLASSES), lambda b, s: (0, 0)),      # bias resident
        ],
        out_specs=pl.BlockSpec((Bt, NUM_CLASSES), lambda b, s: (b, 0)),
        scratch_shapes=[pltpu.VMEM((Bt, HIDDEN), jnp.float32)],
        compiler_params=pltpu.CompilerParams(
            dimension_semantics=("parallel", "arbitrary"),
            vmem_limit_bytes=vmem_limit,
        ),
    )(embedding, w_t, b2d)


def synthetic_bert_model(token_ids, attention_mask, embedding_table):
    """Deterministic stand-in for the injected pretrained bert_model.

    Returns a "last_hidden_state"-shaped tensor [B, S, 768]. Plain-JAX glue (not the hot path).
    """
    emb = embedding_table[token_ids]                                   # [B, S, 768]
    emb = emb * attention_mask[..., None].astype(emb.dtype)
    return emb


def bert_classifier_forward(batch, params):
    samples = batch["question_pairs"]
    attn_mask = batch["attention_mask"]
    embedding = synthetic_bert_model(samples, attn_mask, params["embedding_table"])  # [B,S,768]
    logits = bert_classifier_head(embedding, params["head_weight"], params["head_bias"])
    return logits


def _reference_head(embedding, head_weight, head_bias):
    pooled = embedding.astype(jnp.float32).mean(axis=1)
    return pooled @ head_weight.T.astype(jnp.float32) + head_bias.astype(jnp.float32)


if __name__ == "__main__":
    key = jax.random.PRNGKey(0)
    k_emb, k_w, k_b, k_tok, k_mask, k_emb2, k_emb3 = jax.random.split(key, 7)

    B, S, VOCAB = 2, 8, 32

    # Deterministic parameter init (shapes from the module: Linear(768, 2)).
    params = {
        "embedding_table": jax.random.normal(k_emb, (VOCAB, HIDDEN), dtype=jnp.float32) * 0.02,
        "head_weight": jax.random.normal(k_w, (NUM_CLASSES, HIDDEN), dtype=jnp.float32) * 0.02,
        "head_bias": jax.random.normal(k_b, (NUM_CLASSES,), dtype=jnp.float32) * 0.02,
    }

    batch = {
        "question_pairs": jax.random.randint(k_tok, (B, S), 0, VOCAB, dtype=jnp.int32),
        "attention_mask": jnp.ones((B, S), dtype=jnp.int32),
    }

    # Main forward pass.
    logits = bert_classifier_forward(batch, params)
    logits = jax.block_until_ready(logits)

    emb_ref = synthetic_bert_model(batch["question_pairs"], batch["attention_mask"],
                                   params["embedding_table"])
    ref = _reference_head(emb_ref, params["head_weight"], params["head_bias"])
    assert logits.shape == (B, NUM_CLASSES)
    assert jnp.allclose(logits, ref, atol=1e-4, rtol=1e-4)

    # Check 2: multi-tile seq reduction with a non-multiple-of-8 batch (no padding anywhere).
    B2, S2 = 3, 24
    emb2 = jax.random.normal(k_emb2, (B2, S2, HIDDEN), dtype=jnp.float32)
    logits2 = bert_classifier_head(emb2, params["head_weight"], params["head_bias"],
                                   block_b=8, block_s=8)
    logits2 = jax.block_until_ready(logits2)
    ref2 = _reference_head(emb2, params["head_weight"], params["head_bias"])
    assert logits2.shape == (B2, NUM_CLASSES)
    assert jnp.allclose(logits2, ref2, atol=1e-4, rtol=1e-4)

    # Check 3: bf16 streaming + partial last seq tile (seq_rem=8) + 2 batch blocks
    # (second one partial) — exercises the no-pad remainder paths end to end.
    B3, S3 = 10, 40
    emb3 = (jax.random.normal(k_emb3, (B3, S3, HIDDEN), dtype=jnp.float32)
            .astype(jnp.bfloat16))
    logits3 = bert_classifier_head(emb3, params["head_weight"], params["head_bias"],
                                   block_b=8, block_s=16)
    logits3 = jax.block_until_ready(logits3)
    ref3 = _reference_head(emb3, params["head_weight"], params["head_bias"])
    assert logits3.shape == (B3, NUM_CLASSES)
    assert jnp.allclose(logits3, ref3, atol=1e-3, rtol=1e-3)

    print("KERNEL_OK")
</pallas_src>

<mosaic_0001>
module attributes {stable_mosaic.version = 11 : i64} {
  func.func @_head_kernel(%arg0: i32, %arg1: i32, %arg2: memref<2x8x768xf32, #tpu.memory_space<vmem>>, %arg3: memref<768x2xf32, #tpu.memory_space<vmem>>, %arg4: memref<1x2xf32, #tpu.memory_space<vmem>>, %arg5: memref<2x2xf32, #tpu.memory_space<vmem>>, %arg6: memref<2x768xf32, #tpu.memory_space<vmem>>) attributes {dimension_semantics = [#tpu.dimension_semantics<parallel>, #tpu.dimension_semantics<arbitrary>], iteration_bounds = array<i64: 1, 1>, scalar_prefetch = 0 : i64, scratch_operands = 1 : i64, tpu.core_type = #tpu.core_type<tc>, window_params = [{transform_indices = @transform_0, window_bounds = array<i64: 2, 8, 768>}, {pipeline_mode = #tpu.pipeline_mode<synchronous>, transform_indices = @transform_1, window_bounds = array<i64: 768, 2>}, {pipeline_mode = #tpu.pipeline_mode<synchronous>, transform_indices = @transform_2, window_bounds = array<i64: 1, 2>}, {transform_indices = @transform_3, window_bounds = array<i64: 2, 2>}]} {
    %c0_i32 = arith.constant 0 : i32
    %0 = arith.cmpi eq, %arg1, %c0_i32 : i32
    %1 = arith.extui %0 : i1 to i32
    %c0_i32_0 = arith.constant 0 : i32
    %2 = arith.cmpi ne, %1, %c0_i32_0 : i32
    scf.if %2 {
      %cst_9 = arith.constant 0.000000e+00 : f32
      %11 = vector.broadcast %cst_9 : f32 to vector<2x768xf32>
      %c0_10 = arith.constant 0 : index
      %c0_11 = arith.constant 0 : index
      %12 = vector.load %arg6[%c0_10, %c0_11] : memref<2x768xf32, #tpu.memory_space<vmem>>, vector<2x768xf32>
      tpu.vector_store %arg6[%c0_10, %c0_11], %11 {strides = array<i32>} : memref<2x768xf32, #tpu.memory_space<vmem>>, vector<2x768xf32>,
    } else {
    }
    %c0 = arith.constant 0 : index
    %c0_1 = arith.constant 0 : index
    %3 = vector.load %arg6[%c0, %c0_1] : memref<2x768xf32, #tpu.memory_space<vmem>>, vector<2x768xf32>
    %c0_2 = arith.constant 0 : index
    %c0_3 = arith.constant 0 : index
    %c0_4 = arith.constant 0 : index
    %4 = vector.load %arg2[%c0_2, %c0_3, %c0_4] : memref<2x8x768xf32, #tpu.memory_space<vmem>>, vector<2x8x768xf32>
    %cst = arith.constant dense<0.000000e+00> : vector<2x768xf32>
    %5 = vector.multi_reduction <add>, %4, %cst [1] : vector<2x8x768xf32> to vector<2x768xf32>
    %6 = arith.addf %3, %5 : vector<2x768xf32>
    %c0_5 = arith.constant 0 : index
    %c0_6 = arith.constant 0 : index
    %7 = vector.load %arg6[%c0_5, %c0_6] : memref<2x768xf32, #tpu.memory_space<vmem>>, vector<2x768xf32>
    tpu.vector_store %arg6[%c0_5, %c0_6], %6 {strides = array<i32>} : memref<2x768xf32, #tpu.memory_space<vmem>>, vector<2x768xf32>,
    %c0_i32_7 = arith.constant 0 : i32
    %8 = arith.cmpi eq, %arg1, %c0_i32_7 : i32
    %9 = arith.extui %8 : i1 to i32
    %c0_i32_8 = arith.constant 0 : i32
    %10 = arith.cmpi ne, %9, %c0_i32_8 : i32
    scf.if %10 {
      %c0_9 = arith.constant 0 : index
      %c0_10 = arith.constant 0 : index
      %11 = vector.load %arg6[%c0_9, %c0_10] : memref<2x768xf32, #tpu.memory_space<vmem>>, vector<2x768xf32>
      %c0_11 = arith.constant 0 : index
      %c0_12 = arith.constant 0 : index
      %12 = vector.load %arg3[%c0_11, %c0_12] : memref<768x2xf32, #tpu.memory_space<vmem>>, vector<768x2xf32>
      %cst_13 = arith.constant dense<0.000000e+00> : vector<2x2xf32>
      %13 = tpu.matmul %11, %12, %cst_13 {dimension_numbers = #tpu.dot_dimension_numbers<[1], [0], [0], [1], [0, 0, 1, 1], [], []>} : vector<2x768xf32>, vector<768x2xf32>, vector<2x2xf32> -> vector<2x2xf32>
      %cst_14 = arith.constant 1.250000e-01 : f32
      %14 = vector.broadcast %cst_14 : f32 to vector<2x2xf32>
      %15 = arith.mulf %13, %14 : vector<2x2xf32>
      %c0_15 = arith.constant 0 : index
      %c0_16 = arith.constant 0 : index
      %16 = vector.load %arg4[%c0_15, %c0_16] : memref<1x2xf32, #tpu.memory_space<vmem>>, vector<1x2xf32>
      %17 = vector.broadcast %16 : vector<1x2xf32> to vector<2x2xf32>
      %18 = arith.addf %15, %17 : vector<2x2xf32>
      %c0_17 = arith.constant 0 : index
      %c0_18 = arith.constant 0 : index
      %19 = vector.load %arg5[%c0_17, %c0_18] : memref<2x2xf32, #tpu.memory_space<vmem>>, vector<2x2xf32>
      tpu.vector_store %arg5[%c0_17, %c0_18], %18 {strides = array<i32>} : memref<2x2xf32, #tpu.memory_space<vmem>>, vector<2x2xf32>,
    } else {
    }
    return
  }
  func.func @transform_0(%arg0: i32, %arg1: i32) -> (i32, i32, i32) {
    %c0_i32 = arith.constant 0 : i32
    %c0_i32_0 = arith.constant 0 : i32
    return %arg0, %arg1, %c0_i32 : i32, i32, i32
  }
  func.func @transform_1(%arg0: i32, %arg1: i32) -> (i32, i32) {
    %c0_i32 = arith.constant 0 : i32
    %c0_i32_0 = arith.constant 0 : i32
    %c0_i32_1 = arith.constant 0 : i32
    return %c0_i32, %c0_i32_0 : i32, i32
  }
  func.func @transform_2(%arg0: i32, %arg1: i32) -> (i32, i32) {
    %c0_i32 = arith.constant 0 : i32
    %c0_i32_0 = arith.constant 0 : i32
    %c0_i32_1 = arith.constant 0 : i32
    return %c0_i32, %c0_i32_0 : i32, i32
  }
  func.func @transform_3(%arg0: i32, %arg1: i32) -> (i32, i32) {
    %c0_i32 = arith.constant 0 : i32
    %c0_i32_0 = arith.constant 0 : i32
    return %arg0, %c0_i32 : i32, i32
  }
}

</mosaic_0001>

<llo_original>
// kernel: tpu_custom_call.1
$region0: #{tpu_custom_call.1}
  #allocation0 [shape = 'u32[]', space=smem, size = 0x4, offset = 0x4, fixed_abs, tag = 'smem constant byte address 0x4 - core index']
  #allocation1 [shape = 'u32[144,128]{1,0:T(1,128)}', space=vmem, size = 0x12000, scoped, tag = 'internal scratch']
  #allocation2 [shape = 'f32[2,768]{1,0:T(2,128)}', space=vmem, size = 0x1800, scoped, tag = 'scratch operand']
  %s0 = inlined_call_operand.vmem [shape: f32[2,8,768], index: 0, kind: input, shape index: {}]
  %s1 = inlined_call_operand.vmem [shape: f32[768,2], index: 1, kind: input, shape index: {}]
  %s2 = inlined_call_operand.vmem [shape: f32[1,2], index: 2, kind: input, shape index: {}]
  %s3 = inlined_call_operand.hbm [shape: f32[2,2], index: 3, kind: output, shape index: {}]
  %s4 = sld [smem:[#allocation0]]
  $region30: #{tpu_custom_call.1} parent=0
    _
  %s6 = ssub.s32 1, %s4
  %s7 = scalar_select 0, %s6, %s4
  $region1: #{tpu_custom_call.1} parent=0
    #allocation3 [shape = 'u8[1024]{0}', space=vmem, size = 0x400, scoped, tag = 'output window, operand 0, single buffered']
    #allocation4 [shape = 's32[1]{0}', space=sflag, size = 0x4, scoped, tag = 'scoped memory for tpu_custom_call.1']
    %8 = vsyncpa [#allocation4], 0
    // Predicated region
    $region2: #{tpu_custom_call.1} parent=1 // pred_check
      _
    $region3: #{tpu_custom_call.1} parent=1 // pred_check_branch
      %10 = sbr.rel (0) target = $region5
    $region4: #{tpu_custom_call.1} parent=1 // pred_region
      _
    $region5: #{tpu_custom_call.1} parent=1 // pred_fallthru
      _
    // Predicated region
    $region6: #{tpu_custom_call.1} parent=1 // pred_check
      _
    $region7: #{tpu_custom_call.1} parent=1 // pred_check_branch
      %12 = sbr.rel (0) target = $region9
    $region8: #{tpu_custom_call.1} parent=1 // pred_region
      _
    $region9: #{tpu_custom_call.1} parent=1 // pred_fallthru
      _
    // Predicated region
    $region10: #{tpu_custom_call.1} parent=1 // pred_check
      _
    $region11: #{tpu_custom_call.1} parent=1 // pred_check_branch
      %14 = sbr.rel (0) target = $region13
    $region12: #{tpu_custom_call.1} parent=1 // pred_region
      _
    $region13: #{tpu_custom_call.1} parent=1 // pred_fallthru
      _
    %p15 = scmp.eq.s32.totalorder 0, 0
    // Predicated region
    $region14: #{tpu_custom_call.1} parent=1 // pred_check
      %p16 = pneg %p15
    $region15: #{tpu_custom_call.1} parent=1 // pred_check_branch
      %18 = sbr.rel (%p16) target = $region17
    $region16: #{tpu_custom_call.1} parent=1 // pred_region
      %19 = vst [vmem:[#allocation2] sm:$0xff] 0.0
      %20 = vst [vmem:[#allocation2 + $0x8] sm:$0xf] 0.0
    $region17: #{tpu_custom_call.1} parent=1 // pred_fallthru
      _
    %v21 = vld [vmem:[#allocation2] sm:$0xff]
    %v22 = vld [vmem:[#allocation2 + $0x8] sm:$0xf]
    %v23 = vld [vmem:[%s0] sm:$0xff]
    %v24 = vld [vmem:[%s0 + $0x8] sm:$0xff]
    %v25 = vld [vmem:[%s0 + $0x10] sm:$0xff]
    %v26 = vld [vmem:[%s0 + $0x18] sm:$0xff]
    %v27 = vld [vmem:[%s0 + $0x20] sm:$0xff]
    %v28 = vld [vmem:[%s0 + $0x28] sm:$0xff]
    %v29 = vld [vmem:[%s0 + $0x30] sm:$0xff]
    %v30 = vld [vmem:[%s0 + $0x38] sm:$0xff]
    %v31 = vld [vmem:[%s0 + $0x40] sm:$0xff]
    %v32 = vld [vmem:[%s0 + $0x48] sm:$0xff]
    %v33 = vld [vmem:[%s0 + $0x50] sm:$0xff]
    %v34 = vld [vmem:[%s0 + $0x58] sm:$0xff]
    %v35 = vrot.slane %v23, 4
    %v36 = vadd.f32 %v23, %v35
    %v37 = vrot.slane %v36, 2
    %v38 = vadd.f32 %v36, %v37
    %v39 = vrot.slane %v38, 1
    %v40 = vadd.f32 %v38, %v39
    %v41 = vrot.slane %v24, 4
    %v42 = vadd.f32 %v24, %v41
    %v43 = vrot.slane %v42, 2
    %v44 = vadd.f32 %v42, %v43
    %v45 = vrot.slane %v44, 1
    %v46 = vadd.f32 %v44, %v45
    %v47 = vrot.slane %v25, 4
    %v48 = vadd.f32 %v25, %v47
    %v49 = vrot.slane %v48, 2
    %v50 = vadd.f32 %v48, %v49
    %v51 = vrot.slane %v50, 1
    %v52 = vadd.f32 %v50, %v51
    %v53 = vrot.slane %v26, 4
    %v54 = vadd.f32 %v26, %v53
    %v55 = vrot.slane %v54, 2
    %v56 = vadd.f32 %v54, %v55
    %v57 = vrot.slane %v56, 1
    %v58 = vadd.f32 %v56, %v57
    %v59 = vrot.slane %v27, 4
    %v60 = vadd.f32 %v27, %v59
    %v61 = vrot.slane %v60, 2
    %v62 = vadd.f32 %v60, %v61
    %v63 = vrot.slane %v62, 1
    %v64 = vadd.f32 %v62, %v63
    %v65 = vrot.slane %v28, 4
    %v66 = vadd.f32 %v28, %v65
    %v67 = vrot.slane %v66, 2
    %v68 = vadd.f32 %v66, %v67
    %v69 = vrot.slane %v68, 1
    %v70 = vadd.f32 %v68, %v69
    %v71 = vrot.slane %v29, 4
    %v72 = vadd.f32 %v29, %v71
    %v73 = vrot.slane %v72, 2
    %v74 = vadd.f32 %v72, %v73
    %v75 = vrot.slane %v74, 1
    %v76 = vadd.f32 %v74, %v75
    %v77 = vrot.slane %v30, 4
    %v78 = vadd.f32 %v30, %v77
    %v79 = vrot.slane %v78, 2
    %v80 = vadd.f32 %v78, %v79
    %v81 = vrot.slane %v80, 1
    %v82 = vadd.f32 %v80, %v81
    %v83 = vrot.slane %v31, 4
    %v84 = vadd.f32 %v31, %v83
    %v85 = vrot.slane %v84, 2
    %v86 = vadd.f32 %v84, %v85
    %v87 = vrot.slane %v86, 1
    %v88 = vadd.f32 %v86, %v87
    %v89 = vrot.slane %v32, 4
    %v90 = vadd.f32 %v32, %v89
    %v91 = vrot.slane %v90, 2
    %v92 = vadd.f32 %v90, %v91
    %v93 = vrot.slane %v92, 1
    %v94 = vadd.f32 %v92, %v93
    %v95 = vrot.slane %v33, 4
    %v96 = vadd.f32 %v33, %v95
    %v97 = vrot.slane %v96, 2
    %v98 = vadd.f32 %v96, %v97
    %v99 = vrot.slane %v98, 1
    %v100 = vadd.f32 %v98, %v99
    %v101 = vrot.slane %v34, 4
    %v102 = vadd.f32 %v34, %v101
    %v103 = vrot.slane %v102, 2
    %v104 = vadd.f32 %v102, %v103
    %v105 = vrot.slane %v104, 1
    %v106 = vadd.f32 %v104, %v105
    %v119 = vcombine.low %v40, %v46
    %v120 = vcombine.low %v52, %v58
    %v122 = vunpack.c.l.s4 1983009808
    %v123 = vunpack.c.0.s8 %v122
    %v124 = vlaneseq
    %v125 = vshrl.u32 %v124, 7
    %v126 = vsub.s32 %v123, %v125
    %v127 = vrot.slane %v119, %v126
    %v129 = vunpack.c.l.s4 1983009808
    %v130 = vunpack.c.0.s8 %v129
    %v131 = vlaneseq
    %v132 = vshrl.u32 %v131, 7
    %v133 = vsub.s32 %v130, %v132
    %v134 = vrot.slane %v120, %v133
    %v135 = vcombine.low %v127, %v134
    %v136 = vcombine.low %v64, %v70
    %v138 = vunpack.c.l.s4 1983009808
    %v139 = vunpack.c.0.s8 %v138
    %v140 = vlaneseq
    %v141 = vshrl.u32 %v140, 7
    %v142 = vsub.s32 %v139, %v141
    %v143 = vrot.slane %v136, %v142
    %v144 = vcombine.low %v76, %v82
    %v145 = vcombine.low %v88, %v94
    %v147 = vunpack.c.l.s4 1983009808
    %v148 = vunpack.c.0.s8 %v147
    %v149 = vlaneseq
    %v150 = vshrl.u32 %v149, 7
    %v151 = vsub.s32 %v148, %v150
    %v152 = vrot.slane %v144, %v151
    %v154 = vunpack.c.l.s4 1983009808
    %v155 = vunpack.c.0.s8 %v154
    %v156 = vlaneseq
    %v157 = vshrl.u32 %v156, 7
    %v158 = vsub.s32 %v155, %v157
    %v159 = vrot.slane %v145, %v158
    %v160 = vcombine.low %v152, %v159
    %v161 = vcombine.low %v100, %v106
    %v163 = vunpack.c.l.s4 1983009808
    %v164 = vunpack.c.0.s8 %v163
    %v165 = vlaneseq
    %v166 = vshrl.u32 %v165, 7
    %v167 = vsub.s32 %v164, %v166
    %v168 = vrot.slane %v161, %v167
    %vm169 = vcmask 1044484
    %v170 = vsel %vm169, %v135, %v135
    %vm171 = vcmask 1046534
    %v172 = vsel %vm171, %v135, %v170
    %v173 = vrot.slane %v160, 7
    %vm174 = vcmask 1041409
    %v175 = vsel %vm174, %v173, %v172
    %vm176 = vcmask 1043459
    %v177 = vsel %vm176, %v173, %v175
    %vm178 = vcmask 1045509
    %v179 = vsel %vm178, %v173, %v177
    %vm180 = vcmask 1047559
    %v181 = vsel %vm180, %v173, %v179
    %v182 = vsel %vm169, %v143, %v143
    %v183 = vsel %vm171, %v143, %v182
    %v184 = vrot.slane %v168, 7
    %v185 = vsel %vm174, %v184, %v183
    %v186 = vsel %vm176, %v184, %v185
    %v187 = vsel %vm178, %v184, %v186
    %v188 = vsel %vm180, %v184, %v187
    %v191 = vadd.f32 %v21, %v181
    %v192 = vadd.f32 %v22, %v188
    %193 = vst [vmem:[#allocation2] sm:$0xff] %v191
    %194 = vst [vmem:[#allocation2 + $0x8] sm:$0xf] %v192
    // Predicated region
    $region18: #{tpu_custom_call.1} parent=1 // pred_check
      %p195 = pneg %p15
    $region19: #{tpu_custom_call.1} parent=1 // pred_check_branch
      %197 = sbr.rel (%p195) target = $region21
    $region20: #{tpu_custom_call.1} parent=1 // pred_region
      %v198 = vld [vmem:[#allocation2] sm:$0xff]
      %v199 = vld [vmem:[#allocation2 + $0x8] sm:$0xf]
      %v200 = vld [vmem:[%s1] sm:$0xff]
      %v201 = vld [vmem:[%s1 + $0x8] sm:$0xff]
      %v202 = vld [vmem:[%s1 + $0x10] sm:$0xff]
      %v203 = vld [vmem:[%s1 + $0x18] sm:$0xff]
      %v204 = vld [vmem:[%s1 + $0x20] sm:$0xff]
      %v205 = vld [vmem:[%s1 + $0x28] sm:$0xff]
      %v206 = vld [vmem:[%s1 + $0x30] sm:$0xff]
      %v207 = vld [vmem:[%s1 + $0x38] sm:$0xff]
      %v208 = vld [vmem:[%s1 + $0x40] sm:$0xff]
      %v209 = vld [vmem:[%s1 + $0x48] sm:$0xff]
      %v210 = vld [vmem:[%s1 + $0x50] sm:$0xff]
      %v211 = vld [vmem:[%s1 + $0x58] sm:$0xff]
      %v212 = vld [vmem:[%s1 + $0x60] sm:$0xff]
      %v213 = vld [vmem:[%s1 + $0x68] sm:$0xff]
      %v214 = vld [vmem:[%s1 + $0x70] sm:$0xff]
      %v215 = vld [vmem:[%s1 + $0x78] sm:$0xff]
      %v216 = vld [vmem:[%s1 + $0x80] sm:$0xff]
      %v217 = vld [vmem:[%s1 + $0x88] sm:$0xff]
      %v218 = vld [vmem:[%s1 + $0x90] sm:$0xff]
      %v219 = vld [vmem:[%s1 + $0x98] sm:$0xff]
      %v220 = vld [vmem:[%s1 + $0xa0] sm:$0xff]
      %v221 = vld [vmem:[%s1 + $0xa8] sm:$0xff]
      %v222 = vld [vmem:[%s1 + $0xb0] sm:$0xff]
      %v223 = vld [vmem:[%s1 + $0xb8] sm:$0xff]
      %v224 = vld [vmem:[%s1 + $0xc0] sm:$0xff]
      %v225 = vld [vmem:[%s1 + $0xc8] sm:$0xff]
      %v226 = vld [vmem:[%s1 + $0xd0] sm:$0xff]
      %v227 = vld [vmem:[%s1 + $0xd8] sm:$0xff]
      %v228 = vld [vmem:[%s1 + $0xe0] sm:$0xff]
      %v229 = vld [vmem:[%s1 + $0xe8] sm:$0xff]
      %v230 = vld [vmem:[%s1 + $0xf0] sm:$0xff]
      %v231 = vld [vmem:[%s1 + $0xf8] sm:$0xff]
      %v232 = vld [vmem:[%s1 + $0x100] sm:$0xff]
      %v233 = vld [vmem:[%s1 + $0x108] sm:$0xff]
      %v234 = vld [vmem:[%s1 + $0x110] sm:$0xff]
      %v235 = vld [vmem:[%s1 + $0x118] sm:$0xff]
      %v236 = vld [vmem:[%s1 + $0x120] sm:$0xff]
      %v237 = vld [vmem:[%s1 + $0x128] sm:$0xff]
      %v238 = vld [vmem:[%s1 + $0x130] sm:$0xff]
      %v239 = vld [vmem:[%s1 + $0x138] sm:$0xff]
      %v240 = vld [vmem:[%s1 + $0x140] sm:$0xff]
      %v241 = vld [vmem:[%s1 + $0x148] sm:$0xff]
      %v242 = vld [vmem:[%s1 + $0x150] sm:$0xff]
      %v243 = vld [vmem:[%s1 + $0x158] sm:$0xff]
      %v244 = vld [vmem:[%s1 + $0x160] sm:$0xff]
      %v245 = vld [vmem:[%s1 + $0x168] sm:$0xff]
      %v246 = vld [vmem:[%s1 + $0x170] sm:$0xff]
      %v247 = vld [vmem:[%s1 + $0x178] sm:$0xff]
      %v248 = vld [vmem:[%s1 + $0x180] sm:$0xff]
      %v249 = vld [vmem:[%s1 + $0x188] sm:$0xff]
      %v250 = vld [vmem:[%s1 + $0x190] sm:$0xff]
      %v251 = vld [vmem:[%s1 + $0x198] sm:$0xff]
      %v252 = vld [vmem:[%s1 + $0x1a0] sm:$0xff]
      %v253 = vld [vmem:[%s1 + $0x1a8] sm:$0xff]
      %v254 = vld [vmem:[%s1 + $0x1b0] sm:$0xff]
      %v255 = vld [vmem:[%s1 + $0x1b8] sm:$0xff]
      %v256 = vld [vmem:[%s1 + $0x1c0] sm:$0xff]
      %v257 = vld [vmem:[%s1 + $0x1c8] sm:$0xff]
      %v258 = vld [vmem:[%s1 + $0x1d0] sm:$0xff]
      %v259 = vld [vmem:[%s1 + $0x1d8] sm:$0xff]
      %v260 = vld [vmem:[%s1 + $0x1e0] sm:$0xff]
      %v261 = vld [vmem:[%s1 + $0x1e8] sm:$0xff]
      %v262 = vld [vmem:[%s1 + $0x1f0] sm:$0xff]
      %v263 = vld [vmem:[%s1 + $0x1f8] sm:$0xff]
      %v264 = vld [vmem:[%s1 + $0x200] sm:$0xff]
      %v265 = vld [vmem:[%s1 + $0x208] sm:$0xff]
      %v266 = vld [vmem:[%s1 + $0x210] sm:$0xff]
      %v267 = vld [vmem:[%s1 + $0x218] sm:$0xff]
      %v268 = vld [vmem:[%s1 + $0x220] sm:$0xff]
      %v269 = vld [vmem:[%s1 + $0x228] sm:$0xff]
      %v270 = vld [vmem:[%s1 + $0x230] sm:$0xff]
      %v271 = vld [vmem:[%s1 + $0x238] sm:$0xff]
      %v272 = vld [vmem:[%s1 + $0x240] sm:$0xff]
      %v273 = vld [vmem:[%s1 + $0x248] sm:$0xff]
      %v274 = vld [vmem:[%s1 + $0x250] sm:$0xff]
      %v275 = vld [vmem:[%s1 + $0x258] sm:$0xff]
      %v276 = vld [vmem:[%s1 + $0x260] sm:$0xff]
      %v277 = vld [vmem:[%s1 + $0x268] sm:$0xff]
      %v278 = vld [vmem:[%s1 + $0x270] sm:$0xff]
      %v279 = vld [vmem:[%s1 + $0x278] sm:$0xff]
      %v280 = vld [vmem:[%s1 + $0x280] sm:$0xff]
      %v281 = vld [vmem:[%s1 + $0x288] sm:$0xff]
      %v282 = vld [vmem:[%s1 + $0x290] sm:$0xff]
      %v283 = vld [vmem:[%s1 + $0x298] sm:$0xff]
      %v284 = vld [vmem:[%s1 + $0x2a0] sm:$0xff]
      %v285 = vld [vmem:[%s1 + $0x2a8] sm:$0xff]
      %v286 = vld [vmem:[%s1 + $0x2b0] sm:$0xff]
      %v287 = vld [vmem:[%s1 + $0x2b8] sm:$0xff]
      %v288 = vld [vmem:[%s1 + $0x2c0] sm:$0xff]
      %v289 = vld [vmem:[%s1 + $0x2c8] sm:$0xff]
      %v290 = vld [vmem:[%s1 + $0x2d0] sm:$0xff]
      %v291 = vld [vmem:[%s1 + $0x2d8] sm:$0xff]
      %v292 = vld [vmem:[%s1 + $0x2e0] sm:$0xff]
      %v293 = vld [vmem:[%s1 + $0x2e8] sm:$0xff]
      %v294 = vld [vmem:[%s1 + $0x2f0] sm:$0xff]
      %v295 = vld [vmem:[%s1 + $0x2f8] sm:$0xff]
      %v298 = vcombine.high %v198, %v198
      %v300 = vunpack.c.l.s4 1983009808
      %v301 = vunpack.c.0.s8 %v300
      %v302 = vlaneseq
      %v303 = vshrl.u32 %v302, 7
      %v304 = vsub.s32 %v301, %v303
      %v305 = vrot.slane %v198, %v304
      %v307 = vunpack.c.l.s4 1983009808
      %v308 = vunpack.c.0.s8 %v307
      %v309 = vlaneseq
      %v310 = vshrl.u32 %v309, 7
      %v311 = vsub.s32 %v308, %v310
      %v312 = vrot.slane %v298, %v311
      %v313 = vcombine.high %v305, %v305
      %v314 = vcombine.high %v312, %v312
      %v316 = vunpack.c.l.s4 1983009808
      %v317 = vunpack.c.0.s8 %v316
      %v318 = vlaneseq
      %v319 = vshrl.u32 %v318, 7
      %v320 = vsub.s32 %v317, %v319
      %v321 = vrot.slane %v199, %v320
      %v322 = vcombine.high %v321, %v321
      %329 = vmatprep.subr.mxu0 0.0
      %330 = vmatpush1.msra.mxu0 %v200
      %331 = vmatprep.subr.mxu0 0.0
      %332 = vmatpush1.msra.mxu0 %v201
      %333 = vmatprep.subr.mxu0 0.0
      %334 = vmatpush1.msra.mxu0 %v202
      %335 = vmatprep.subr.mxu0 0.0
      %336 = vmatpush1.msra.mxu0 %v203
      %337 = vmatprep.subr.mxu0 0.0
      %338 = vmatpush1.msra.mxu0 %v204
      %339 = vmatprep.subr.mxu0 0.0
      %340 = vmatpush1.msra.mxu0 %v205
      %341 = vmatprep.subr.mxu0 0.0
      %342 = vmatpush1.msra.mxu0 %v206
      %343 = vmatprep.subr.mxu0 0.0
      %344 = vmatpush1.msra.mxu0 %v207
      %345 = vmatprep.subr.mxu0 0.0
      %346 = vmatpush1.msra.mxu0 %v208
      %347 = vmatprep.subr.mxu0 0.0
      %348 = vmatpush1.msra.mxu0 %v209
      %349 = vmatprep.subr.mxu0 0.0
      %350 = vmatpush1.msra.mxu0 %v210
      %351 = vmatprep.subr.mxu0 0.0
      %352 = vmatpush1.msra.mxu0 %v211
      %353 = vmatprep.subr.mxu0 0.0
      %354 = vmatpush1.msra.mxu0 %v212
      %355 = vmatprep.subr.mxu0 0.0
      %356 = vmatpush1.msra.mxu0 %v213
      %357 = vmatprep.subr.mxu0 0.0
      %358 = vmatpush1.msra.mxu0 %v214
      %359 = vmatprep.subr.mxu0 0.0
      %360 = vmatpush1.msra.mxu0 %v215
      %361 = vmatprep.subr.mxu0 0.0
      %362 = vmatpush1.msra.mxu0 %v216
      %363 = vmatprep.subr.mxu0 0.0
      %364 = vmatpush1.msra.mxu0 %v217
      %365 = vmatprep.subr.mxu0 0.0
      %366 = vmatpush1.msra.mxu0 %v218
      %367 = vmatprep.subr.mxu0 0.0
      %368 = vmatpush1.msra.mxu0 %v219
      %369 = vmatprep.subr.mxu0 0.0
      %370 = vmatpush1.msra.mxu0 %v220
      %371 = vmatprep.subr.mxu0 0.0
      %372 = vmatpush1.msra.mxu0 %v221
      %373 = vmatprep.subr.mxu0 0.0
      %374 = vmatpush1.msra.mxu0 %v222
      %375 = vmatprep.subr.mxu0 0.0
      %376 = vmatpush1.msra.mxu0 %v223
      %377 = vmatprep.subr.mxu0 0.0
      %378 = vmatpush1.msra.mxu0 %v224
      %379 = vmatprep.subr.mxu0 0.0
      %380 = vmatpush1.msra.mxu0 %v225
      %381 = vmatprep.subr.mxu0 0.0
      %382 = vmatpush1.msra.mxu0 %v226
      %383 = vmatprep.subr.mxu0 0.0
      %384 = vmatpush1.msra.mxu0 %v227
      %385 = vmatprep.subr.mxu0 0.0
      %386 = vmatpush1.msra.mxu0 %v228
      %387 = vmatprep.subr.mxu0 0.0
      %388 = vmatpush1.msra.mxu0 %v229
      %389 = vmatprep.subr.mxu0 0.0
      %390 = vmatpush1.msra.mxu0 %v230
      %391 = vmatprep.subr.mxu0 0.0
      %392 = vmatpush1.msra.mxu0 %v231
      %393 = vmatprep.mubr.f32.mxu0 %v313
      %394 = vmatmul.mubr.f32.gmra.mrb[0].mxu0 %v305
      %v395 = vpop.f32.mrb[0].mxu0
      %v396 = vadd.f32 0.0, %v395
      %v397 = vpop.f32.mrb[0].mxu0
      %398 = vdwg.mxu0
      %399 = vmatprep.subr.mxu0 0.0
      %400 = vmatpush1.msra.mxu0 %v232
      %401 = vmatprep.subr.mxu0 0.0
      %402 = vmatpush1.msra.mxu0 %v233
      %403 = vmatprep.subr.mxu0 0.0
      %404 = vmatpush1.msra.mxu0 %v234
      %405 = vmatprep.subr.mxu0 0.0
      %406 = vmatpush1.msra.mxu0 %v235
      %407 = vmatprep.subr.mxu0 0.0
      %408 = vmatpush1.msra.mxu0 %v236
      %409 = vmatprep.subr.mxu0 0.0
      %410 = vmatpush1.msra.mxu0 %v237
      %411 = vmatprep.subr.mxu0 0.0
      %412 = vmatpush1.msra.mxu0 %v238
      %413 = vmatprep.subr.mxu0 0.0
      %414 = vmatpush1.msra.mxu0 %v239
      %415 = vmatprep.subr.mxu0 0.0
      %416 = vmatpush1.msra.mxu0 %v240
      %417 = vmatprep.subr.mxu0 0.0
      %418 = vmatpush1.msra.mxu0 %v241
      %419 = vmatprep.subr.mxu0 0.0
      %420 = vmatpush1.msra.mxu0 %v242
      %421 = vmatprep.subr.mxu0 0.0
      %422 = vmatpush1.msra.mxu0 %v243
      %423 = vmatprep.subr.mxu0 0.0
      %424 = vmatpush1.msra.mxu0 %v244
      %425 = vmatprep.subr.mxu0 0.0
      %426 = vmatpush1.msra.mxu0 %v245
      %427 = vmatprep.subr.mxu0 0.0
      %428 = vmatpush1.msra.mxu0 %v246
      %429 = vmatprep.subr.mxu0 0.0
      %430 = vmatpush1.msra.mxu0 %v247
      %431 = vmatprep.subr.mxu0 0.0
      %432 = vmatpush1.msra.mxu0 %v248
      %433 = vmatprep.subr.mxu0 0.0
      %434 = vmatpush1.msra.mxu0 %v249
      %435 = vmatprep.subr.mxu0 0.0
      %436 = vmatpush1.msra.mxu0 %v250
      %437 = vmatprep.subr.mxu0 0.0
      %438 = vmatpush1.msra.mxu0 %v251
      %439 = vmatprep.subr.mxu0 0.0
      %440 = vmatpush1.msra.mxu0 %v252
      %441 = vmatprep.subr.mxu0 0.0
      %442 = vmatpush1.msra.mxu0 %v253
      %443 = vmatprep.subr.mxu0 0.0
      %444 = vmatpush1.msra.mxu0 %v254
      %445 = vmatprep.subr.mxu0 0.0
      %446 = vmatpush1.msra.mxu0 %v255
      %447 = vmatprep.subr.mxu0 0.0
      %448 = vmatpush1.msra.mxu0 %v256
      %449 = vmatprep.subr.mxu0 0.0
      %450 = vmatpush1.msra.mxu0 %v257
      %451 = vmatprep.subr.mxu0 0.0
      %452 = vmatpush1.msra.mxu0 %v258
      %453 = vmatprep.subr.mxu0 0.0
      %454 = vmatpush1.msra.mxu0 %v259
      %455 = vmatprep.subr.mxu0 0.0
      %456 = vmatpush1.msra.mxu0 %v260
      %457 = vmatprep.subr.mxu0 0.0
      %458 = vmatpush1.msra.mxu0 %v261
      %459 = vmatprep.subr.mxu0 0.0
      %460 = vmatpush1.msra.mxu0 %v262
      %461 = vmatprep.subr.mxu0 0.0
      %462 = vmatpush1.msra.mxu0 %v263
      %463 = vmatprep.mubr.f32.mxu0 %v314
      %464 = vmatmul.mubr.f32.gmra.mrb[0].mxu0 %v312
      %v465 = vpop.f32.mrb[0].mxu0
      %v466 = vadd.f32 %v396, %v465
      %v467 = vpop.f32.mrb[0].mxu0
      %468 = vdwg.mxu0
      %469 = vmatprep.subr.mxu0 0.0
      %470 = vmatpush1.msra.mxu0 %v264
      %471 = vmatprep.subr.mxu0 0.0
      %472 = vmatpush1.msra.mxu0 %v265
      %473 = vmatprep.subr.mxu0 0.0
      %474 = vmatpush1.msra.mxu0 %v266
      %475 = vmatprep.subr.mxu0 0.0
      %476 = vmatpush1.msra.mxu0 %v267
      %477 = vmatprep.subr.mxu0 0.0
      %478 = vmatpush1.msra.mxu0 %v268
      %479 = vmatprep.subr.mxu0 0.0
      %480 = vmatpush1.msra.mxu0 %v269
      %481 = vmatprep.subr.mxu0 0.0
      %482 = vmatpush1.msra.mxu0 %v270
      %483 = vmatprep.subr.mxu0 0.0
      %484 = vmatpush1.msra.mxu0 %v271
      %485 = vmatprep.subr.mxu0 0.0
      %486 = vmatpush1.msra.mxu0 %v272
      %487 = vmatprep.subr.mxu0 0.0
      %488 = vmatpush1.msra.mxu0 %v273
      %489 = vmatprep.subr.mxu0 0.0
      %490 = vmatpush1.msra.mxu0 %v274
      %491 = vmatprep.subr.mxu0 0.0
      %492 = vmatpush1.msra.mxu0 %v275
      %493 = vmatprep.subr.mxu0 0.0
      %494 = vmatpush1.msra.mxu0 %v276
      %495 = vmatprep.subr.mxu0 0.0
      %496 = vmatpush1.msra.mxu0 %v277
      %497 = vmatprep.subr.mxu0 0.0
      %498 = vmatpush1.msra.mxu0 %v278
      %499 = vmatprep.subr.mxu0 0.0
      %500 = vmatpush1.msra.mxu0 %v279
      %501 = vmatprep.subr.mxu0 0.0
      %502 = vmatpush1.msra.mxu0 %v280
      %503 = vmatprep.subr.mxu0 0.0
      %504 = vmatpush1.msra.mxu0 %v281
      %505 = vmatprep.subr.mxu0 0.0
      %506 = vmatpush1.msra.mxu0 %v282
      %507 = vmatprep.subr.mxu0 0.0
      %508 = vmatpush1.msra.mxu0 %v283
      %509 = vmatprep.subr.mxu0 0.0
      %510 = vmatpush1.msra.mxu0 %v284
      %511 = vmatprep.subr.mxu0 0.0
      %512 = vmatpush1.msra.mxu0 %v285
      %513 = vmatprep.subr.mxu0 0.0
      %514 = vmatpush1.msra.mxu0 %v286
      %515 = vmatprep.subr.mxu0 0.0
      %516 = vmatpush1.msra.mxu0 %v287
      %517 = vmatprep.subr.mxu0 0.0
      %518 = vmatpush1.msra.mxu0 %v288
      %519 = vmatprep.subr.mxu0 0.0
      %520 = vmatpush1.msra.mxu0 %v289
      %521 = vmatprep.subr.mxu0 0.0
      %522 = vmatpush1.msra.mxu0 %v290
      %523 = vmatprep.subr.mxu0 0.0
      %524 = vmatpush1.msra.mxu0 %v291
      %525 = vmatprep.subr.mxu0 0.0
      %526 = vmatpush1.msra.mxu0 %v292
      %527 = vmatprep.subr.mxu0 0.0
      %528 = vmatpush1.msra.mxu0 %v293
      %529 = vmatprep.subr.mxu0 0.0
      %530 = vmatpush1.msra.mxu0 %v294
      %531 = vmatprep.subr.mxu0 0.0
      %532 = vmatpush1.msra.mxu0 %v295
      %533 = vmatprep.mubr.f32.mxu0 %v322
      %534 = vmatmul.mubr.f32.gmra.mrb[0].mxu0 %v321
      %v535 = vpop.f32.mrb[0].mxu0
      %v536 = vadd.f32 %v466, %v535
      %v537 = vpop.f32.mrb[0].mxu0
      %538 = vdwg.mxu0
      %v539 = vmul.f32 %v536, 0.125
      %v540 = vld [vmem:[%s2] sm:$0x1]
      %v542 = vlaneseq
      %v543 = vshrl.u32 %v542, 7
      %v544 = vsub.s32 0, %v543
      %v545 = vrot.slane %v540, %v544
      %v547 = vadd.f32 %v539, %v545
      %vm548 = vcmask 9216
      %549 = vst.msk [vmem:[#allocation3] sm:$0x3] %vm548, %v547
    $region21: #{tpu_custom_call.1} parent=1 // pred_fallthru
      _
    // Predicated region
    $region22: #{tpu_custom_call.1} parent=1 // pred_check
      _
    $region23: #{tpu_custom_call.1} parent=1 // pred_check_branch
      %551 = sbr.rel (0) target = $region25
    $region24: #{tpu_custom_call.1} parent=1 // pred_region
      %s553 = ssub.s32 32, 32
      %554 = vsyncadd [#allocation4], %s553
      %s556 = sshll.u32 [#allocation3], 4
      %s557 = int_to_ptr.vmem [resolvable:$true] %s556
      %559 = dma.vmem_to_hbm [thread:$0]  %s557, 32, %s3, [#allocation4]
    $region25: #{tpu_custom_call.1} parent=1 // pred_fallthru
      _
    // Predicated region
    $region26: #{tpu_custom_call.1} parent=1 // pred_check
      _
    $region27: #{tpu_custom_call.1} parent=1 // pred_check_branch
      %561 = sbr.rel (0) target = $region29
    $region28: #{tpu_custom_call.1} parent=1 // pred_region
      %562 = dma.done [#allocation4], 32
    $region29: #{tpu_custom_call.1} parent=1 // pred_fallthru
      _
    %563 = vsyncpa [#allocation4], 1

</llo_original>
